<compile_context>
chip_gen: v7x
topology: tpu7x:2x2x1
jax: 0.10.0
libtpu: 0.0.40
codegen_flags: <defaults>
</compile_context>

<pallas_src>
import functools

import jax
import jax.numpy as jnp
import numpy as np
from jax.experimental import pallas as pl
from jax.experimental.pallas import tpu as pltpu


_TOKEN_TILE = 128   # tokens per grid step (multiple of 8 -> dense stores)
_ROW_TILE = 128     # table rows per grid step in the pre-normalize kernel


def _layernorm_rows_kernel(x_ref, gamma_ref, beta_ref, o_ref, *, eps):
    """Row-wise LayerNorm of a (rows, D) tile (torch LayerNorm semantics)."""
    x = x_ref[...].astype(jnp.float32)                     # (R, D)
    mean = jnp.mean(x, axis=-1, keepdims=True)             # (R, 1)
    # single-pass biased variance: E[x^2] - mean^2
    var = jnp.mean(x * x, axis=-1, keepdims=True) - mean * mean
    inv = jax.lax.rsqrt(var + eps)                         # EUP rsqrt
    scale = inv * gamma_ref[...].astype(jnp.float32)       # fold gamma into inv
    y = (x - mean) * scale + beta_ref[...].astype(jnp.float32)
    o_ref[...] = y.astype(o_ref.dtype)


def _layernorm_rows(table, gamma, beta, *, eps):
    """LayerNorm every row of the (V, D) embedding table (one-time cost)."""
    v, d = table.shape
    bv = min(_ROW_TILE, v)
    kernel = functools.partial(_layernorm_rows_kernel, eps=eps)
    return pl.pallas_call(
        kernel,
        out_shape=jax.ShapeDtypeStruct((v, d), table.dtype),
        grid=(pl.cdiv(v, bv),),
        in_specs=[
            pl.BlockSpec((bv, d), lambda i: (i, 0)),
            pl.BlockSpec((1, d), lambda i: (0, 0)),   # gamma: constant block
            pl.BlockSpec((1, d), lambda i: (0, 0)),   # beta : constant block
        ],
        out_specs=pl.BlockSpec((bv, d), lambda i: (i, 0)),
        compiler_params=pltpu.CompilerParams(
            dimension_semantics=("parallel",)),
    )(table, gamma.reshape(1, d), beta.reshape(1, d))


def _gather_rows_kernel(ids_ref, table_ref, o_ref):
    """Gather T rows of the VMEM-resident table via a one-hot MXU matmul."""
    ids = ids_ref[...]                                      # (T, 1) int32
    t = ids.shape[0]
    v = table_ref.shape[0]
    iota = jax.lax.broadcasted_iota(jnp.int32, (t, v), 1)   # (T, V)
    onehot = jnp.where(ids == iota, 1.0, 0.0).astype(jnp.float32)
    rows = jnp.dot(onehot, table_ref[...].astype(jnp.float32),
                   preferred_element_type=jnp.float32)      # (T, D) on the MXU
    o_ref[...] = rows.astype(o_ref.dtype)                   # dense (T, D) store


def _gather_rows(norm_table, ids_flat):
    """Token-tiled gather: out[i] = norm_table[ids_flat[i]]."""
    v, d = norm_table.shape
    n = ids_flat.shape[0]
    t = _TOKEN_TILE
    n_tiles = pl.cdiv(n, t)
    n_pad = n_tiles * t

    ids = jnp.clip(ids_flat.astype(jnp.int32), 0, v - 1)    # guard OOB ids
    ids = jnp.pad(ids, (0, n_pad - n))                      # pad with id 0
    ids2 = ids.reshape(n_pad, 1)

    out = pl.pallas_call(
        _gather_rows_kernel,
        out_shape=jax.ShapeDtypeStruct((n_pad, d), norm_table.dtype),
        grid=(n_tiles,),
        in_specs=[
            pl.BlockSpec((t, 1), lambda i: (i, 0)),          # token-id tile
            pl.BlockSpec((v, d), lambda i: (0, 0)),          # whole table, VMEM
        ],
        out_specs=pl.BlockSpec((t, d), lambda i: (i, 0)),    # dense output tile
        compiler_params=pltpu.CompilerParams(
            dimension_semantics=("parallel",)),
    )(ids2, norm_table)
    return out[:n]


def _embed_layernorm(input_ids, table, gamma, beta, *, eps):
    """Gather rows of `table` at `input_ids`, then LayerNorm(gamma, beta).

    Implemented as LN(table)[ids]: the LN is hoisted to a one-time (V, D)
    kernel and the per-token kernel is a pure tiled gather.
    Dropout(p=0) is the identity -> nothing to do.
    """
    d = table.shape[1]
    norm_table = _layernorm_rows(table, gamma, beta, eps=eps)
    ids_flat = input_ids.reshape(-1)
    out = _gather_rows(norm_table, ids_flat)
    return out.reshape(input_ids.shape + (d,))


class CM2WordEmbeddingPallas:
    """Pallas/JAX port of futureframe.models.cm2.CM2WordEmbedding.

    Weights are initialized deterministically in-script (no .pt loading):
      - word_embeddings_header: stands in for the pretrained BERT embedding.
      - word_embeddings_value : nn.Embedding default init (normal), padding
        row zeroed.
      - norm_header weight/bias: stands in for the loaded BERT LayerNorm
        parameters (non-trivial deterministic values).
      - norm_value: standard LayerNorm init (ones / zeros).
    """

    def __init__(self, vocab_size=128, vocab_dim=256, padding_idx=0,
                 layer_norm_eps=1e-5, key=jax.random.PRNGKey(0)):
        self.eps = float(layer_norm_eps)
        k_h, k_v, k_w, k_b = jax.random.split(key, 4)

        header = jax.random.normal(k_h, (vocab_size, vocab_dim), jnp.float32)
        value = jax.random.normal(k_v, (vocab_size, vocab_dim), jnp.float32)
        # padding_idx row is zeroed (matches nn.Embedding(padding_idx=...) init)
        header = header.at[padding_idx].set(0.0)
        value = value.at[padding_idx].set(0.0)
        self.word_embeddings_header = header
        self.word_embeddings_value = value

        # norm_header params emulate the "loaded" BERT layernorm weights.
        self.norm_header_weight = 1.0 + 0.1 * jax.random.normal(
            k_w, (vocab_dim,), jnp.float32)
        self.norm_header_bias = 0.1 * jax.random.normal(
            k_b, (vocab_dim,), jnp.float32)
        # norm_value: default LayerNorm init.
        self.norm_value_weight = jnp.ones((vocab_dim,), jnp.float32)
        self.norm_value_bias = jnp.zeros((vocab_dim,), jnp.float32)

    def __call__(self, input_ids, emb_type):
        if emb_type == "header":
            return _embed_layernorm(
                input_ids, self.word_embeddings_header,
                self.norm_header_weight, self.norm_header_bias, eps=self.eps)
        elif emb_type == "value":
            return _embed_layernorm(
                input_ids, self.word_embeddings_value,
                self.norm_value_weight, self.norm_value_bias, eps=self.eps)
        else:
            raise RuntimeError(f"no {emb_type} word_embedding method!")


def _reference(input_ids, table, gamma, beta, eps):
    emb = table[input_ids]
    mean = emb.mean(-1, keepdims=True)
    var = ((emb - mean) ** 2).mean(-1, keepdims=True)
    return (emb - mean) / jnp.sqrt(var + eps) * gamma + beta


if __name__ == "__main__":
    vocab_size, vocab_dim = 128, 256
    module = CM2WordEmbeddingPallas(vocab_size=vocab_size, vocab_dim=vocab_dim,
                                    key=jax.random.PRNGKey(0))

    # Small token-id batch consistent with the module's forward: (batch=2, seq=8).
    ids_key = jax.random.PRNGKey(0)
    input_ids = jax.random.randint(ids_key, (2, 8), 0, vocab_size,
                                   dtype=jnp.int32)

    out_header = module(input_ids, "header")
    out_value = module(input_ids, "value")
    jax.block_until_ready(out_header)
    jax.block_until_ready(out_value)

    ref_header = _reference(input_ids, module.word_embeddings_header,
                            module.norm_header_weight, module.norm_header_bias,
                            module.eps)
    ref_value = _reference(input_ids, module.word_embeddings_value,
                           module.norm_value_weight, module.norm_value_bias,
                           module.eps)

    assert out_header.shape == input_ids.shape + (vocab_dim,)
    assert out_value.shape == input_ids.shape + (vocab_dim,)
    np.testing.assert_allclose(np.asarray(out_header), np.asarray(ref_header),
                               rtol=1e-4, atol=1e-4)
    np.testing.assert_allclose(np.asarray(out_value), np.asarray(ref_value),
                               rtol=1e-4, atol=1e-4)
    print("KERNEL_OK")
</pallas_src>

<mosaic_0001>
module attributes {stable_mosaic.version = 11 : i64} {
  func.func @_layernorm_rows_kernel(%arg0: i32, %arg1: memref<128x256xf32, #tpu.memory_space<vmem>>, %arg2: memref<1x256xf32, #tpu.memory_space<vmem>>, %arg3: memref<1x256xf32, #tpu.memory_space<vmem>>, %arg4: memref<128x256xf32, #tpu.memory_space<vmem>>) attributes {dimension_semantics = [#tpu.dimension_semantics<parallel>], iteration_bounds = array<i64: 1>, scalar_prefetch = 0 : i64, scratch_operands = 0 : i64, tpu.core_type = #tpu.core_type<tc>, window_params = [{transform_indices = @transform_0, window_bounds = array<i64: 128, 256>}, {pipeline_mode = #tpu.pipeline_mode<synchronous>, transform_indices = @transform_1, window_bounds = array<i64: 1, 256>}, {pipeline_mode = #tpu.pipeline_mode<synchronous>, transform_indices = @transform_2, window_bounds = array<i64: 1, 256>}, {transform_indices = @transform_3, window_bounds = array<i64: 128, 256>}]} {
    %c0 = arith.constant 0 : index
    %c0_0 = arith.constant 0 : index
    %0 = vector.load %arg1[%c0, %c0_0] : memref<128x256xf32, #tpu.memory_space<vmem>>, vector<128x256xf32>
    %cst = arith.constant dense<0.000000e+00> : vector<128xf32>
    %1 = vector.multi_reduction <add>, %0, %cst [1] : vector<128x256xf32> to vector<128xf32>
    %2 = vector.shape_cast %1 : vector<128xf32> to vector<128x1xf32>
    %cst_1 = arith.constant 2.560000e+02 : f32
    %3 = vector.broadcast %cst_1 : f32 to vector<128x1xf32>
    %4 = arith.divf %2, %3 : vector<128x1xf32>
    %5 = arith.mulf %0, %0 : vector<128x256xf32>
    %cst_2 = arith.constant dense<0.000000e+00> : vector<128xf32>
    %6 = vector.multi_reduction <add>, %5, %cst_2 [1] : vector<128x256xf32> to vector<128xf32>
    %7 = vector.shape_cast %6 : vector<128xf32> to vector<128x1xf32>
    %cst_3 = arith.constant 2.560000e+02 : f32
    %8 = vector.broadcast %cst_3 : f32 to vector<128x1xf32>
    %9 = arith.divf %7, %8 : vector<128x1xf32>
    %10 = arith.mulf %4, %4 : vector<128x1xf32>
    %11 = arith.subf %9, %10 : vector<128x1xf32>
    %cst_4 = arith.constant 9.99999974E-6 : f32
    %12 = vector.broadcast %cst_4 : f32 to vector<128x1xf32>
    %13 = arith.addf %11, %12 : vector<128x1xf32>
    %14 = math.rsqrt %13 : vector<128x1xf32>
    %c0_5 = arith.constant 0 : index
    %c0_6 = arith.constant 0 : index
    %15 = vector.load %arg2[%c0_5, %c0_6] : memref<1x256xf32, #tpu.memory_space<vmem>>, vector<1x256xf32>
    %16 = vector.broadcast %14 : vector<128x1xf32> to vector<128x256xf32>
    %17 = vector.broadcast %15 : vector<1x256xf32> to vector<128x256xf32>
    %18 = arith.mulf %16, %17 : vector<128x256xf32>
    %19 = vector.broadcast %4 : vector<128x1xf32> to vector<128x256xf32>
    %20 = arith.subf %0, %19 : vector<128x256xf32>
    %21 = arith.mulf %20, %18 : vector<128x256xf32>
    %c0_7 = arith.constant 0 : index
    %c0_8 = arith.constant 0 : index
    %22 = vector.load %arg3[%c0_7, %c0_8] : memref<1x256xf32, #tpu.memory_space<vmem>>, vector<1x256xf32>
    %23 = vector.broadcast %22 : vector<1x256xf32> to vector<128x256xf32>
    %24 = arith.addf %21, %23 : vector<128x256xf32>
    %c0_9 = arith.constant 0 : index
    %c0_10 = arith.constant 0 : index
    %25 = vector.load %arg4[%c0_9, %c0_10] : memref<128x256xf32, #tpu.memory_space<vmem>>, vector<128x256xf32>
    tpu.vector_store %arg4[%c0_9, %c0_10], %24 {strides = array<i32>} : memref<128x256xf32, #tpu.memory_space<vmem>>, vector<128x256xf32>,
    return
  }
  func.func @transform_0(%arg0: i32) -> (i32, i32) {
    %c0_i32 = arith.constant 0 : i32
    %c0_i32_0 = arith.constant 0 : i32
    return %arg0, %c0_i32 : i32, i32
  }
  func.func @transform_1(%arg0: i32) -> (i32, i32) {
    %c0_i32 = arith.constant 0 : i32
    %c0_i32_0 = arith.constant 0 : i32
    %c0_i32_1 = arith.constant 0 : i32
    return %c0_i32, %c0_i32_0 : i32, i32
  }
  func.func @transform_2(%arg0: i32) -> (i32, i32) {
    %c0_i32 = arith.constant 0 : i32
    %c0_i32_0 = arith.constant 0 : i32
    %c0_i32_1 = arith.constant 0 : i32
    return %c0_i32, %c0_i32_0 : i32, i32
  }
  func.func @transform_3(%arg0: i32) -> (i32, i32) {
    %c0_i32 = arith.constant 0 : i32
    %c0_i32_0 = arith.constant 0 : i32
    return %arg0, %c0_i32 : i32, i32
  }
}

</mosaic_0001>

<llo_original>
// kernel: tpu_custom_call.1
$region0: #{tpu_custom_call.1}
  #allocation0 [shape = 'u32[]', space=smem, size = 0x4, offset = 0x4, fixed_abs, tag = 'smem constant byte address 0x4 - core index']
  #allocation1 [shape = 'u32[144,128]{1,0:T(1,128)}', space=vmem, size = 0x12000, scoped, tag = 'internal scratch']
  %s0 = inlined_call_operand.hbm [shape: f32[128,256], index: 0, kind: input, shape index: {}]
  %s1 = inlined_call_operand.vmem [shape: f32[1,256], index: 1, kind: input, shape index: {}]
  %s2 = inlined_call_operand.vmem [shape: f32[1,256], index: 2, kind: input, shape index: {}]
  %s3 = inlined_call_operand.hbm [shape: f32[128,256], index: 3, kind: output, shape index: {}]
  %s4 = sld [smem:[#allocation0]]
  $region26: #{tpu_custom_call.1} parent=0
    _
  %s6 = ssub.s32 1, %s4
  %s7 = scalar_select 0, %s6, %s4
  $region1: #{tpu_custom_call.1} parent=0
    #allocation2 [shape = 'u8[131072]{0}', space=vmem, size = 0x20000, scoped, tag = 'input window, operand 0, single buffered']
    #allocation3 [shape = 's32[1]{0}', space=sflag, size = 0x4, scoped, tag = 'scoped memory for tpu_custom_call.1']
    #allocation4 [shape = 's32[1]{0}', space=sflag, size = 0x4, scoped, tag = 'scoped memory for tpu_custom_call.1']
    #allocation5 [shape = 'u8[131072]{0}', space=vmem, size = 0x20000, scoped, tag = 'output window, operand 0, single buffered']
    %8 = vsyncpa [#allocation3], 0
    %9 = vsyncpa [#allocation4], 0
    // Predicated region
    $region2: #{tpu_custom_call.1} parent=1 // pred_check
      _
    $region3: #{tpu_custom_call.1} parent=1 // pred_check_branch
      %11 = sbr.rel (0) target = $region5
    $region4: #{tpu_custom_call.1} parent=1 // pred_region
      %s13 = ssub.s32 4096, 4096
      %14 = vsyncadd [#allocation3], %s13
      %s15 = sshll.u32 [#allocation2], 4
      %s16 = int_to_ptr.vmem [resolvable:$true] %s15
      %21 = dma.hbm_to_vmem [thread:$0]  %s0, 4096, %s16, [#allocation3], 256, 256, 16
    $region5: #{tpu_custom_call.1} parent=1 // pred_fallthru
      _
    // Predicated region
    $region6: #{tpu_custom_call.1} parent=1 // pred_check
      _
    $region7: #{tpu_custom_call.1} parent=1 // pred_check_branch
      %23 = sbr.rel (0) target = $region9
    $region8: #{tpu_custom_call.1} parent=1 // pred_region
      _
    $region9: #{tpu_custom_call.1} parent=1 // pred_fallthru
      _
    // Predicated region
    $region10: #{tpu_custom_call.1} parent=1 // pred_check
      _
    $region11: #{tpu_custom_call.1} parent=1 // pred_check_branch
      %25 = sbr.rel (0) target = $region13
    $region12: #{tpu_custom_call.1} parent=1 // pred_region
      _
    $region13: #{tpu_custom_call.1} parent=1 // pred_fallthru
      _
    // Predicated region
    $region14: #{tpu_custom_call.1} parent=1 // pred_check
      _
    $region15: #{tpu_custom_call.1} parent=1 // pred_check_branch
      %27 = sbr.rel (0) target = $region17
    $region16: #{tpu_custom_call.1} parent=1 // pred_region
      %28 = dma.done [#allocation3], 4096
    $region17: #{tpu_custom_call.1} parent=1 // pred_fallthru
      _
    %v29 = vld [vmem:[#allocation2] sm:$0xff]
    %v30 = vld [vmem:[#allocation2 + $0x8] sm:$0xff]
    %v31 = vld [vmem:[#allocation2 + $0x10] sm:$0xff]
    %v32 = vld [vmem:[#allocation2 + $0x18] sm:$0xff]
    %v33 = vld [vmem:[#allocation2 + $0x20] sm:$0xff]
    %v34 = vld [vmem:[#allocation2 + $0x28] sm:$0xff]
    %v35 = vld [vmem:[#allocation2 + $0x30] sm:$0xff]
    %v36 = vld [vmem:[#allocation2 + $0x38] sm:$0xff]
    %v37 = vld [vmem:[#allocation2 + $0x40] sm:$0xff]
    %v38 = vld [vmem:[#allocation2 + $0x48] sm:$0xff]
    %v39 = vld [vmem:[#allocation2 + $0x50] sm:$0xff]
    %v40 = vld [vmem:[#allocation2 + $0x58] sm:$0xff]
    %v41 = vld [vmem:[#allocation2 + $0x60] sm:$0xff]
    %v42 = vld [vmem:[#allocation2 + $0x68] sm:$0xff]
    %v43 = vld [vmem:[#allocation2 + $0x70] sm:$0xff]
    %v44 = vld [vmem:[#allocation2 + $0x78] sm:$0xff]
    %v45 = vld [vmem:[#allocation2 + $0x80] sm:$0xff]
    %v46 = vld [vmem:[#allocation2 + $0x88] sm:$0xff]
    %v47 = vld [vmem:[#allocation2 + $0x90] sm:$0xff]
    %v48 = vld [vmem:[#allocation2 + $0x98] sm:$0xff]
    %v49 = vld [vmem:[#allocation2 + $0xa0] sm:$0xff]
    %v50 = vld [vmem:[#allocation2 + $0xa8] sm:$0xff]
    %v51 = vld [vmem:[#allocation2 + $0xb0] sm:$0xff]
    %v52 = vld [vmem:[#allocation2 + $0xb8] sm:$0xff]
    %v53 = vld [vmem:[#allocation2 + $0xc0] sm:$0xff]
    %v54 = vld [vmem:[#allocation2 + $0xc8] sm:$0xff]
    %v55 = vld [vmem:[#allocation2 + $0xd0] sm:$0xff]
    %v56 = vld [vmem:[#allocation2 + $0xd8] sm:$0xff]
    %v57 = vld [vmem:[#allocation2 + $0xe0] sm:$0xff]
    %v58 = vld [vmem:[#allocation2 + $0xe8] sm:$0xff]
    %v59 = vld [vmem:[#allocation2 + $0xf0] sm:$0xff]
    %v60 = vld [vmem:[#allocation2 + $0xf8] sm:$0xff]
    %v61 = vadd.f32 %v29, %v30
    %62 = vadd.xlane.f32.xlu0 %v61
    %v63 = vpop.xlane.xlu0 %62
    %v64 = vadd.f32 %v31, %v32
    %65 = vadd.xlane.f32.xlu0 %v64
    %v66 = vpop.xlane.xlu0 %65
    %v67 = vadd.f32 %v33, %v34
    %68 = vadd.xlane.f32.xlu0 %v67
    %v69 = vpop.xlane.xlu0 %68
    %v70 = vadd.f32 %v35, %v36
    %71 = vadd.xlane.f32.xlu0 %v70
    %v72 = vpop.xlane.xlu0 %71
    %v73 = vadd.f32 %v37, %v38
    %74 = vadd.xlane.f32.xlu0 %v73
    %v75 = vpop.xlane.xlu0 %74
    %v76 = vadd.f32 %v39, %v40
    %77 = vadd.xlane.f32.xlu0 %v76
    %v78 = vpop.xlane.xlu0 %77
    %v79 = vadd.f32 %v41, %v42
    %80 = vadd.xlane.f32.xlu0 %v79
    %v81 = vpop.xlane.xlu0 %80
    %v82 = vadd.f32 %v43, %v44
    %83 = vadd.xlane.f32.xlu0 %v82
    %v84 = vpop.xlane.xlu0 %83
    %v85 = vadd.f32 %v45, %v46
    %86 = vadd.xlane.f32.xlu0 %v85
    %v87 = vpop.xlane.xlu0 %86
    %v88 = vadd.f32 %v47, %v48
    %89 = vadd.xlane.f32.xlu0 %v88
    %v90 = vpop.xlane.xlu0 %89
    %v91 = vadd.f32 %v49, %v50
    %92 = vadd.xlane.f32.xlu0 %v91
    %v93 = vpop.xlane.xlu0 %92
    %v94 = vadd.f32 %v51, %v52
    %95 = vadd.xlane.f32.xlu0 %v94
    %v96 = vpop.xlane.xlu0 %95
    %v97 = vadd.f32 %v53, %v54
    %98 = vadd.xlane.f32.xlu0 %v97
    %v99 = vpop.xlane.xlu0 %98
    %v100 = vadd.f32 %v55, %v56
    %101 = vadd.xlane.f32.xlu0 %v100
    %v102 = vpop.xlane.xlu0 %101
    %v103 = vadd.f32 %v57, %v58
    %104 = vadd.xlane.f32.xlu0 %v103
    %v105 = vpop.xlane.xlu0 %104
    %v106 = vadd.f32 %v59, %v60
    %107 = vadd.xlane.f32.xlu0 %v106
    %v108 = vpop.xlane.xlu0 %107
    %v109 = vrcp.pop 256.0
    %v110 = vmul.f32 %v63, %v109
    %v111 = vmul.f32 %v66, %v109
    %v112 = vmul.f32 %v69, %v109
    %v113 = vmul.f32 %v72, %v109
    %v114 = vmul.f32 %v75, %v109
    %v115 = vmul.f32 %v78, %v109
    %v116 = vmul.f32 %v81, %v109
    %v117 = vmul.f32 %v84, %v109
    %v118 = vmul.f32 %v87, %v109
    %v119 = vmul.f32 %v90, %v109
    %v120 = vmul.f32 %v93, %v109
    %v121 = vmul.f32 %v96, %v109
    %v122 = vmul.f32 %v99, %v109
    %v123 = vmul.f32 %v102, %v109
    %v124 = vmul.f32 %v105, %v109
    %v125 = vmul.f32 %v108, %v109
    %v126 = vmul.f32 %v29, %v29
    %v127 = vmul.f32 %v30, %v30
    %v128 = vmul.f32 %v31, %v31
    %v129 = vmul.f32 %v32, %v32
    %v130 = vmul.f32 %v33, %v33
    %v131 = vmul.f32 %v34, %v34
    %v132 = vmul.f32 %v35, %v35
    %v133 = vmul.f32 %v36, %v36
    %v134 = vmul.f32 %v37, %v37
    %v135 = vmul.f32 %v38, %v38
    %v136 = vmul.f32 %v39, %v39
    %v137 = vmul.f32 %v40, %v40
    %v138 = vmul.f32 %v41, %v41
    %v139 = vmul.f32 %v42, %v42
    %v140 = vmul.f32 %v43, %v43
    %v141 = vmul.f32 %v44, %v44
    %v142 = vmul.f32 %v45, %v45
    %v143 = vmul.f32 %v46, %v46
    %v144 = vmul.f32 %v47, %v47
    %v145 = vmul.f32 %v48, %v48
    %v146 = vmul.f32 %v49, %v49
    %v147 = vmul.f32 %v50, %v50
    %v148 = vmul.f32 %v51, %v51
    %v149 = vmul.f32 %v52, %v52
    %v150 = vmul.f32 %v53, %v53
    %v151 = vmul.f32 %v54, %v54
    %v152 = vmul.f32 %v55, %v55
    %v153 = vmul.f32 %v56, %v56
    %v154 = vmul.f32 %v57, %v57
    %v155 = vmul.f32 %v58, %v58
    %v156 = vmul.f32 %v59, %v59
    %v157 = vmul.f32 %v60, %v60
    %v158 = vadd.f32 %v126, %v127
    %159 = vadd.xlane.f32.xlu0 %v158
    %v160 = vpop.xlane.xlu0 %159
    %v161 = vadd.f32 %v128, %v129
    %162 = vadd.xlane.f32.xlu0 %v161
    %v163 = vpop.xlane.xlu0 %162
    %v164 = vadd.f32 %v130, %v131
    %165 = vadd.xlane.f32.xlu0 %v164
    %v166 = vpop.xlane.xlu0 %165
    %v167 = vadd.f32 %v132, %v133
    %168 = vadd.xlane.f32.xlu0 %v167
    %v169 = vpop.xlane.xlu0 %168
    %v170 = vadd.f32 %v134, %v135
    %171 = vadd.xlane.f32.xlu0 %v170
    %v172 = vpop.xlane.xlu0 %171
    %v173 = vadd.f32 %v136, %v137
    %174 = vadd.xlane.f32.xlu0 %v173
    %v175 = vpop.xlane.xlu0 %174
    %v176 = vadd.f32 %v138, %v139
    %177 = vadd.xlane.f32.xlu0 %v176
    %v178 = vpop.xlane.xlu0 %177
    %v179 = vadd.f32 %v140, %v141
    %180 = vadd.xlane.f32.xlu0 %v179
    %v181 = vpop.xlane.xlu0 %180
    %v182 = vadd.f32 %v142, %v143
    %183 = vadd.xlane.f32.xlu0 %v182
    %v184 = vpop.xlane.xlu0 %183
    %v185 = vadd.f32 %v144, %v145
    %186 = vadd.xlane.f32.xlu0 %v185
    %v187 = vpop.xlane.xlu0 %186
    %v188 = vadd.f32 %v146, %v147
    %189 = vadd.xlane.f32.xlu0 %v188
    %v190 = vpop.xlane.xlu0 %189
    %v191 = vadd.f32 %v148, %v149
    %192 = vadd.xlane.f32.xlu0 %v191
    %v193 = vpop.xlane.xlu0 %192
    %v194 = vadd.f32 %v150, %v151
    %195 = vadd.xlane.f32.xlu0 %v194
    %v196 = vpop.xlane.xlu0 %195
    %v197 = vadd.f32 %v152, %v153
    %198 = vadd.xlane.f32.xlu0 %v197
    %v199 = vpop.xlane.xlu0 %198
    %v200 = vadd.f32 %v154, %v155
    %201 = vadd.xlane.f32.xlu0 %v200
    %v202 = vpop.xlane.xlu0 %201
    %v203 = vadd.f32 %v156, %v157
    %204 = vadd.xlane.f32.xlu0 %v203
    %v205 = vpop.xlane.xlu0 %204
    %v206 = vmul.f32 %v160, %v109
    %v207 = vmul.f32 %v163, %v109
    %v208 = vmul.f32 %v166, %v109
    %v209 = vmul.f32 %v169, %v109
    %v210 = vmul.f32 %v172, %v109
    %v211 = vmul.f32 %v175, %v109
    %v212 = vmul.f32 %v178, %v109
    %v213 = vmul.f32 %v181, %v109
    %v214 = vmul.f32 %v184, %v109
    %v215 = vmul.f32 %v187, %v109
    %v216 = vmul.f32 %v190, %v109
    %v217 = vmul.f32 %v193, %v109
    %v218 = vmul.f32 %v196, %v109
    %v219 = vmul.f32 %v199, %v109
    %v220 = vmul.f32 %v202, %v109
    %v221 = vmul.f32 %v205, %v109
    %v222 = vmul.f32 %v110, %v110
    %v223 = vmul.f32 %v111, %v111
    %v224 = vmul.f32 %v112, %v112
    %v225 = vmul.f32 %v113, %v113
    %v226 = vmul.f32 %v114, %v114
    %v227 = vmul.f32 %v115, %v115
    %v228 = vmul.f32 %v116, %v116
    %v229 = vmul.f32 %v117, %v117
    %v230 = vmul.f32 %v118, %v118
    %v231 = vmul.f32 %v119, %v119
    %v232 = vmul.f32 %v120, %v120
    %v233 = vmul.f32 %v121, %v121
    %v234 = vmul.f32 %v122, %v122
    %v235 = vmul.f32 %v123, %v123
    %v236 = vmul.f32 %v124, %v124
    %v237 = vmul.f32 %v125, %v125
    %v238 = vsub.f32 %v206, %v222
    %v239 = vsub.f32 %v207, %v223
    %v240 = vsub.f32 %v208, %v224
    %v241 = vsub.f32 %v209, %v225
    %v242 = vsub.f32 %v210, %v226
    %v243 = vsub.f32 %v211, %v227
    %v244 = vsub.f32 %v212, %v228
    %v245 = vsub.f32 %v213, %v229
    %v246 = vsub.f32 %v214, %v230
    %v247 = vsub.f32 %v215, %v231
    %v248 = vsub.f32 %v216, %v232
    %v249 = vsub.f32 %v217, %v233
    %v250 = vsub.f32 %v218, %v234
    %v251 = vsub.f32 %v219, %v235
    %v252 = vsub.f32 %v220, %v236
    %v253 = vsub.f32 %v221, %v237
    %v254 = vadd.f32 %v238, 1e-05
    %v255 = vadd.f32 %v239, 1e-05
    %v256 = vadd.f32 %v240, 1e-05
    %v257 = vadd.f32 %v241, 1e-05
    %v258 = vadd.f32 %v242, 1e-05
    %v259 = vadd.f32 %v243, 1e-05
    %v260 = vadd.f32 %v244, 1e-05
    %v261 = vadd.f32 %v245, 1e-05
    %v262 = vadd.f32 %v246, 1e-05
    %v263 = vadd.f32 %v247, 1e-05
    %v264 = vadd.f32 %v248, 1e-05
    %v265 = vadd.f32 %v249, 1e-05
    %v266 = vadd.f32 %v250, 1e-05
    %v267 = vadd.f32 %v251, 1e-05
    %v268 = vadd.f32 %v252, 1e-05
    %v269 = vadd.f32 %v253, 1e-05
    %v270 = vrsqrt.pop %v254
    %v271 = vrsqrt.pop %v255
    %v272 = vrsqrt.pop %v256
    %v273 = vrsqrt.pop %v257
    %v274 = vrsqrt.pop %v258
    %v275 = vrsqrt.pop %v259
    %v276 = vrsqrt.pop %v260
    %v277 = vrsqrt.pop %v261
    %v278 = vrsqrt.pop %v262
    %v279 = vrsqrt.pop %v263
    %v280 = vrsqrt.pop %v264
    %v281 = vrsqrt.pop %v265
    %v282 = vrsqrt.pop %v266
    %v283 = vrsqrt.pop %v267
    %v284 = vrsqrt.pop %v268
    %v285 = vrsqrt.pop %v269
    %v286 = vld [vmem:[%s1] sm:$0x3]
    %v288 = vlaneseq
    %v289 = vshrl.u32 %v288, 7
    %v290 = vsub.s32 0, %v289
    %v291 = vrot.slane %v286, %v290
    %v292 = vlaneseq
    %v293 = vshrl.u32 %v292, 7
    %v294 = vsub.s32 1, %v293
    %v295 = vrot.slane %v286, %v294
    %v298 = vmul.f32 %v270, %v291
    %v299 = vmul.f32 %v270, %v295
    %v300 = vmul.f32 %v271, %v291
    %v301 = vmul.f32 %v271, %v295
    %v302 = vmul.f32 %v272, %v291
    %v303 = vmul.f32 %v272, %v295
    %v304 = vmul.f32 %v273, %v291
    %v305 = vmul.f32 %v273, %v295
    %v306 = vmul.f32 %v274, %v291
    %v307 = vmul.f32 %v274, %v295
    %v308 = vmul.f32 %v275, %v291
    %v309 = vmul.f32 %v275, %v295
    %v310 = vmul.f32 %v276, %v291
    %v311 = vmul.f32 %v276, %v295
    %v312 = vmul.f32 %v277, %v291
    %v313 = vmul.f32 %v277, %v295
    %v314 = vmul.f32 %v278, %v291
    %v315 = vmul.f32 %v278, %v295
    %v316 = vmul.f32 %v279, %v291
    %v317 = vmul.f32 %v279, %v295
    %v318 = vmul.f32 %v280, %v291
    %v319 = vmul.f32 %v280, %v295
    %v320 = vmul.f32 %v281, %v291
    %v321 = vmul.f32 %v281, %v295
    %v322 = vmul.f32 %v282, %v291
    %v323 = vmul.f32 %v282, %v295
    %v324 = vmul.f32 %v283, %v291
    %v325 = vmul.f32 %v283, %v295
    %v326 = vmul.f32 %v284, %v291
    %v327 = vmul.f32 %v284, %v295
    %v328 = vmul.f32 %v285, %v291
    %v329 = vmul.f32 %v285, %v295
    %v330 = vsub.f32 %v29, %v110
    %v331 = vsub.f32 %v30, %v110
    %v332 = vsub.f32 %v31, %v111
    %v333 = vsub.f32 %v32, %v111
    %v334 = vsub.f32 %v33, %v112
    %v335 = vsub.f32 %v34, %v112
    %v336 = vsub.f32 %v35, %v113
    %v337 = vsub.f32 %v36, %v113
    %v338 = vsub.f32 %v37, %v114
    %v339 = vsub.f32 %v38, %v114
    %v340 = vsub.f32 %v39, %v115
    %v341 = vsub.f32 %v40, %v115
    %v342 = vsub.f32 %v41, %v116
    %v343 = vsub.f32 %v42, %v116
    %v344 = vsub.f32 %v43, %v117
    %v345 = vsub.f32 %v44, %v117
    %v346 = vsub.f32 %v45, %v118
    %v347 = vsub.f32 %v46, %v118
    %v348 = vsub.f32 %v47, %v119
    %v349 = vsub.f32 %v48, %v119
    %v350 = vsub.f32 %v49, %v120
    %v351 = vsub.f32 %v50, %v120
    %v352 = vsub.f32 %v51, %v121
    %v353 = vsub.f32 %v52, %v121
    %v354 = vsub.f32 %v53, %v122
    %v355 = vsub.f32 %v54, %v122
    %v356 = vsub.f32 %v55, %v123
    %v357 = vsub.f32 %v56, %v123
    %v358 = vsub.f32 %v57, %v124
    %v359 = vsub.f32 %v58, %v124
    %v360 = vsub.f32 %v59, %v125
    %v361 = vsub.f32 %v60, %v125
    %v362 = vmul.f32 %v330, %v298
    %v363 = vmul.f32 %v331, %v299
    %v364 = vmul.f32 %v332, %v300
    %v365 = vmul.f32 %v333, %v301
    %v366 = vmul.f32 %v334, %v302
    %v367 = vmul.f32 %v335, %v303
    %v368 = vmul.f32 %v336, %v304
    %v369 = vmul.f32 %v337, %v305
    %v370 = vmul.f32 %v338, %v306
    %v371 = vmul.f32 %v339, %v307
    %v372 = vmul.f32 %v340, %v308
    %v373 = vmul.f32 %v341, %v309
    %v374 = vmul.f32 %v342, %v310
    %v375 = vmul.f32 %v343, %v311
    %v376 = vmul.f32 %v344, %v312
    %v377 = vmul.f32 %v345, %v313
    %v378 = vmul.f32 %v346, %v314
    %v379 = vmul.f32 %v347, %v315
    %v380 = vmul.f32 %v348, %v316
    %v381 = vmul.f32 %v349, %v317
    %v382 = vmul.f32 %v350, %v318
    %v383 = vmul.f32 %v351, %v319
    %v384 = vmul.f32 %v352, %v320
    %v385 = vmul.f32 %v353, %v321
    %v386 = vmul.f32 %v354, %v322
    %v387 = vmul.f32 %v355, %v323
    %v388 = vmul.f32 %v356, %v324
    %v389 = vmul.f32 %v357, %v325
    %v390 = vmul.f32 %v358, %v326
    %v391 = vmul.f32 %v359, %v327
    %v392 = vmul.f32 %v360, %v328
    %v393 = vmul.f32 %v361, %v329
    %v394 = vld [vmem:[%s2] sm:$0x3]
    %v396 = vlaneseq
    %v397 = vshrl.u32 %v396, 7
    %v398 = vsub.s32 0, %v397
    %v399 = vrot.slane %v394, %v398
    %v400 = vlaneseq
    %v401 = vshrl.u32 %v400, 7
    %v402 = vsub.s32 1, %v401
    %v403 = vrot.slane %v394, %v402
    %v406 = vadd.f32 %v362, %v399
    %v407 = vadd.f32 %v363, %v403
    %v408 = vadd.f32 %v364, %v399
    %v409 = vadd.f32 %v365, %v403
    %v410 = vadd.f32 %v366, %v399
    %v411 = vadd.f32 %v367, %v403
    %v412 = vadd.f32 %v368, %v399
    %v413 = vadd.f32 %v369, %v403
    %v414 = vadd.f32 %v370, %v399
    %v415 = vadd.f32 %v371, %v403
    %v416 = vadd.f32 %v372, %v399
    %v417 = vadd.f32 %v373, %v403
    %v418 = vadd.f32 %v374, %v399
    %v419 = vadd.f32 %v375, %v403
    %v420 = vadd.f32 %v376, %v399
    %v421 = vadd.f32 %v377, %v403
    %v422 = vadd.f32 %v378, %v399
    %v423 = vadd.f32 %v379, %v403
    %v424 = vadd.f32 %v380, %v399
    %v425 = vadd.f32 %v381, %v403
    %v426 = vadd.f32 %v382, %v399
    %v427 = vadd.f32 %v383, %v403
    %v428 = vadd.f32 %v384, %v399
    %v429 = vadd.f32 %v385, %v403
    %v430 = vadd.f32 %v386, %v399
    %v431 = vadd.f32 %v387, %v403
    %v432 = vadd.f32 %v388, %v399
    %v433 = vadd.f32 %v389, %v403
    %v434 = vadd.f32 %v390, %v399
    %v435 = vadd.f32 %v391, %v403
    %v436 = vadd.f32 %v392, %v399
    %v437 = vadd.f32 %v393, %v403
    %438 = vst [vmem:[#allocation5] sm:$0xff] %v406
    %439 = vst [vmem:[#allocation5 + $0x8] sm:$0xff] %v407
    %440 = vst [vmem:[#allocation5 + $0x10] sm:$0xff] %v408
    %441 = vst [vmem:[#allocation5 + $0x18] sm:$0xff] %v409
    %442 = vst [vmem:[#allocation5 + $0x20] sm:$0xff] %v410
    %443 = vst [vmem:[#allocation5 + $0x28] sm:$0xff] %v411
    %444 = vst [vmem:[#allocation5 + $0x30] sm:$0xff] %v412
    %445 = vst [vmem:[#allocation5 + $0x38] sm:$0xff] %v413
    %446 = vst [vmem:[#allocation5 + $0x40] sm:$0xff] %v414
    %447 = vst [vmem:[#allocation5 + $0x48] sm:$0xff] %v415
    %448 = vst [vmem:[#allocation5 + $0x50] sm:$0xff] %v416
    %449 = vst [vmem:[#allocation5 + $0x58] sm:$0xff] %v417
    %450 = vst [vmem:[#allocation5 + $0x60] sm:$0xff] %v418
    %451 = vst [vmem:[#allocation5 + $0x68] sm:$0xff] %v419
    %452 = vst [vmem:[#allocation5 + $0x70] sm:$0xff] %v420
    %453 = vst [vmem:[#allocation5 + $0x78] sm:$0xff] %v421
    %454 = vst [vmem:[#allocation5 + $0x80] sm:$0xff] %v422
    %455 = vst [vmem:[#allocation5 + $0x88] sm:$0xff] %v423
    %456 = vst [vmem:[#allocation5 + $0x90] sm:$0xff] %v424
    %457 = vst [vmem:[#allocation5 + $0x98] sm:$0xff] %v425
    %458 = vst [vmem:[#allocation5 + $0xa0] sm:$0xff] %v426
    %459 = vst [vmem:[#allocation5 + $0xa8] sm:$0xff] %v427
    %460 = vst [vmem:[#allocation5 + $0xb0] sm:$0xff] %v428
    %461 = vst [vmem:[#allocation5 + $0xb8] sm:$0xff] %v429
    %462 = vst [vmem:[#allocation5 + $0xc0] sm:$0xff] %v430
    %463 = vst [vmem:[#allocation5 + $0xc8] sm:$0xff] %v431
    %464 = vst [vmem:[#allocation5 + $0xd0] sm:$0xff] %v432
    %465 = vst [vmem:[#allocation5 + $0xd8] sm:$0xff] %v433
    %466 = vst [vmem:[#allocation5 + $0xe0] sm:$0xff] %v434
    %467 = vst [vmem:[#allocation5 + $0xe8] sm:$0xff] %v435
    %468 = vst [vmem:[#allocation5 + $0xf0] sm:$0xff] %v436
    %469 = vst [vmem:[#allocation5 + $0xf8] sm:$0xff] %v437
    // Predicated region
    $region18: #{tpu_custom_call.1} parent=1 // pred_check
      _
    $region19: #{tpu_custom_call.1} parent=1 // pred_check_branch
      %471 = sbr.rel (0) target = $region21
    $region20: #{tpu_custom_call.1} parent=1 // pred_region
      %s473 = ssub.s32 4096, 4096
      %474 = vsyncadd [#allocation4], %s473
      %s475 = sshll.u32 [#allocation5], 4
      %s476 = int_to_ptr.vmem [resolvable:$true] %s475
      %481 = dma.vmem_to_hbm [thread:$0]  %s476, 4096, %s3, [#allocation4], 256, 256, 16
    $region21: #{tpu_custom_call.1} parent=1 // pred_fallthru
      _
    // Predicated region
    $region22: #{tpu_custom_call.1} parent=1 // pred_check
      _
    $region23: #{tpu_custom_call.1} parent=1 // pred_check_branch
      %483 = sbr.rel (0) target = $region25
    $region24: #{tpu_custom_call.1} parent=1 // pred_region
      %484 = dma.done [#allocation4], 4096
    $region25: #{tpu_custom_call.1} parent=1 // pred_fallthru
      _
    %485 = vsyncpa [#allocation3], 1
    %486 = vsyncpa [#allocation4], 1

</llo_original>
